<compile_context>
chip_gen: v7x
topology: tpu7x:2x2x1
jax: 0.10.0
libtpu: 0.0.40
codegen_flags: <defaults>
</compile_context>

<pallas_src>
import functools

import jax
import jax.numpy as jnp
from jax.experimental import pallas as pl
from jax.experimental.pallas import tpu as pltpu


def _round_up(x, m):
    return -(-x // m) * m


def _complex_conv2d_kernel(wt_ref, b_ref, xa_ref, xb_ref, out_ref, *,
                           kh_sz, kw_sz, wp, tm):
    """One (batch, flat-spatial-tile) step of the fused complex conv.

    wt_ref : [kH*kW, 2*Cout, 2*Cin]  bf16  per-tap combined weights (resident)
    b_ref  : [2*Cout, 1]             f32   combined bias            (resident)
    xa_ref : [2*Cin, TM]             bf16  flat input tile m
    xb_ref : [2*Cin, TM]             bf16  flat input tile m+1 (halo source)
    out_ref: [2*Cout, TM]            f32   flat output tile m
    """
    # Tile + halo slab; concat boundary is lane-aligned (TM % 128 == 0).
    slab = jnp.concatenate([xa_ref[...], xb_ref[...]], axis=-1)   # [2*Cin, 2*TM]

    # Init with the combined bias, then accumulate one MXU dot per spatial tap.
    out_ref[...] = jnp.broadcast_to(b_ref[...], out_ref.shape)
    for kh in range(kh_sz):
        for kw in range(kw_sz):
            d = kh * wp + kw                      # static flat shift of this tap
            xs = slab[:, d:d + tm]                # [2*Cin, TM], static slice
            out_ref[...] += jnp.dot(wt_ref[kh * kw_sz + kw], xs,
                                    preferred_element_type=jnp.float32)


@functools.partial(jax.jit, static_argnames=("padding",))
def complex_conv2d(x, w_re, w_im, b_re, b_im, *, padding=0):
    """x: [B, 2, Cin, H, W]; w_*: [Cout, Cin, kH, kW]; b_*: [Cout].
    Returns [B, 2, Cout, Hout, Wout] (stride=1, dilation=1, groups=1)."""
    B, two, cin, H, W = x.shape
    assert two == 2, "expected complex axis of size 2 at dim 1"
    cout, cin_w, kH, kW = w_re.shape
    assert cin_w == cin

    # [B, 2, Cin, H, W] -> [B, 2*Cin, H, W] (free reshape), bf16 BEFORE padding.
    xc = x.reshape(B, 2 * cin, H, W).astype(jnp.bfloat16)

    Hp, Wp = H + 2 * padding, W + 2 * padding
    Hout, Wout = Hp - kH + 1, Wp - kW + 1
    M_out = Hout * Wp                       # flat outputs incl. garbage right-edge cols
    halo = (kH - 1) * Wp + (kW - 1)         # max flat tap offset

    # Flat-spatial tile: lane-dense (x128), large enough to amortize per-step
    # overhead, >= halo (so one extra tile covers it), and (when the problem is
    # big enough) >= 2 tiles so the M axis can also shard across cores.
    tm = min(2048, _round_up(max(-(-M_out // 2), 128), 128))
    tm = max(tm, _round_up(max(halo, 1), 128))
    Mp = _round_up(M_out, tm)
    nM = Mp // tm

    # ONE pad: conv padding + enough extra zero rows at the bottom so the flat
    # plane contains nM+1 full tiles (the halo tile of the last step).
    Lp = (nM + 1) * tm
    extra_rows = max(0, -(-(Lp - Hp * Wp) // Wp))
    xc = jnp.pad(xc, ((0, 0), (0, 0),
                      (padding, padding + extra_rows),
                      (padding, padding)))
    xf = xc.reshape(B, 2 * cin, (Hp + extra_rows) * Wp)   # flat spatial (free)

    # Combined complex weights: rows 0:Cout -> real out, Cout:2*Cout -> imag out.
    #   real = w_re * xr - w_im * xi ;  imag = w_im * xr + w_re * xi
    w_top = jnp.concatenate([w_re, -w_im], axis=1)        # [Cout, 2*Cin, kH, kW]
    w_bot = jnp.concatenate([w_im, w_re], axis=1)
    wc = jnp.concatenate([w_top, w_bot], axis=0)          # [2*Cout, 2*Cin, kH, kW]
    wt = jnp.transpose(wc, (2, 3, 0, 1)).reshape(kH * kW, 2 * cout, 2 * cin)
    wt = wt.astype(jnp.bfloat16)

    # real bias = b_re - b_im ; imag bias = b_re + b_im
    bias = jnp.concatenate([b_re - b_im, b_re + b_im])
    bias = bias.reshape(2 * cout, 1).astype(jnp.float32)

    kernel = functools.partial(_complex_conv2d_kernel,
                               kh_sz=kH, kw_sz=kW, wp=Wp, tm=tm)

    out = pl.pallas_call(
        kernel,
        out_shape=jax.ShapeDtypeStruct((B, 2 * cout, Mp), jnp.float32),
        grid=(B, nM),
        in_specs=[
            pl.BlockSpec((kH * kW, 2 * cout, 2 * cin), lambda b, m: (0, 0, 0)),
            pl.BlockSpec((2 * cout, 1), lambda b, m: (0, 0)),
            pl.BlockSpec((None, 2 * cin, tm), lambda b, m: (b, 0, m)),      # tile m
            pl.BlockSpec((None, 2 * cin, tm), lambda b, m: (b, 0, m + 1)),  # halo tile
        ],
        out_specs=pl.BlockSpec((None, 2 * cout, tm), lambda b, m: (b, 0, m)),
        compiler_params=pltpu.CompilerParams(
            dimension_semantics=("parallel", "parallel")),
    )(wt, bias, xf, xf)

    # Un-flatten: drop tile padding and garbage right-edge cols; split re/im.
    out = out[:, :, :M_out].reshape(B, 2, cout, Hout, Wp)[..., :Wout]
    return out


def _reference_complex_conv2d(x, w_re, w_im, b_re, b_im, padding):
    """Pure-JAX f32 reference mirroring the PyTorch forward."""
    def conv(inp, w, b):
        out = jax.lax.conv_general_dilated(
            inp, w, window_strides=(1, 1),
            padding=[(padding, padding), (padding, padding)],
            dimension_numbers=("NCHW", "OIHW", "NCHW"))
        return out + b[None, :, None, None]
    xr, xi = x[:, 0], x[:, 1]
    real = conv(xr, w_re, b_re) - conv(xi, w_im, b_im)
    imag = conv(xi, w_re, b_re) + conv(xr, w_im, b_im)
    return jnp.stack((real, imag), axis=1)


if __name__ == "__main__":
    # Module config: ComplexConv2d(in_channels=4, out_channels=8, kernel_size=3, padding=1)
    B, CIN, COUT, H, W, KSZ, PAD = 2, 4, 8, 16, 16, 3, 1

    key = jax.random.PRNGKey(0)
    k_x, k_wr, k_wi, k_br, k_bi = jax.random.split(key, 5)

    x = jax.random.normal(k_x, (B, 2, CIN, H, W), dtype=jnp.float32)
    fan_in = CIN * KSZ * KSZ
    bound = 1.0 / (fan_in ** 0.5)
    w_re = jax.random.uniform(k_wr, (COUT, CIN, KSZ, KSZ), jnp.float32, -bound, bound)
    w_im = jax.random.uniform(k_wi, (COUT, CIN, KSZ, KSZ), jnp.float32, -bound, bound)
    b_re = jax.random.uniform(k_br, (COUT,), jnp.float32, -bound, bound)
    b_im = jax.random.uniform(k_bi, (COUT,), jnp.float32, -bound, bound)

    out = complex_conv2d(x, w_re, w_im, b_re, b_im, padding=PAD)
    out = jax.block_until_ready(out)

    ref = _reference_complex_conv2d(x, w_re, w_im, b_re, b_im, PAD)
    assert out.shape == (B, 2, COUT, H, W), out.shape
    # bf16 MXU inputs (f32 accumulation) -> slightly looser tolerance than f32.
    assert jnp.allclose(out, ref, atol=3e-2, rtol=3e-2), "mismatch vs reference"

    print("KERNEL_OK")
</pallas_src>

<mosaic_0001>
module attributes {stable_mosaic.version = 11 : i64} {
  func.func @_complex_conv2d_kernel(%arg0: i32, %arg1: i32, %arg2: memref<9x16x8xbf16, #tpu.memory_space<vmem>>, %arg3: memref<16x1xf32, #tpu.memory_space<vmem>>, %arg4: memref<1x8x256xbf16, #tpu.memory_space<vmem>>, %arg5: memref<1x8x256xbf16, #tpu.memory_space<vmem>>, %arg6: memref<1x16x256xf32, #tpu.memory_space<vmem>>) attributes {dimension_semantics = [#tpu.dimension_semantics<parallel>, #tpu.dimension_semantics<parallel>], iteration_bounds = array<i64: 2, 2>, scalar_prefetch = 0 : i64, scratch_operands = 0 : i64, tpu.core_type = #tpu.core_type<tc>, window_params = [{pipeline_mode = #tpu.pipeline_mode<synchronous>, transform_indices = @transform_0, window_bounds = array<i64: 9, 16, 8>}, {pipeline_mode = #tpu.pipeline_mode<synchronous>, transform_indices = @transform_1, window_bounds = array<i64: 16, 1>}, {transform_indices = @transform_2, window_bounds = array<i64: 1, 8, 256>}, {transform_indices = @transform_3, window_bounds = array<i64: 1, 8, 256>}, {transform_indices = @transform_4, window_bounds = array<i64: 1, 16, 256>}]} {
    %c0 = arith.constant 0 : index
    %c0_0 = arith.constant 0 : index
    %c0_1 = arith.constant 0 : index
    %0 = vector.load %arg4[%c0, %c0_0, %c0_1] : memref<1x8x256xbf16, #tpu.memory_space<vmem>>, vector<1x8x256xbf16>
    %1 = vector.shape_cast %0 : vector<1x8x256xbf16> to vector<8x256xbf16>
    %c0_2 = arith.constant 0 : index
    %c0_3 = arith.constant 0 : index
    %c0_4 = arith.constant 0 : index
    %2 = vector.load %arg5[%c0_2, %c0_3, %c0_4] : memref<1x8x256xbf16, #tpu.memory_space<vmem>>, vector<1x8x256xbf16>
    %3 = vector.shape_cast %2 : vector<1x8x256xbf16> to vector<8x256xbf16>
    %4 = tpu.concatenate %1, %3 in 1 : vector<8x256xbf16>, vector<8x256xbf16> -> vector<8x512xbf16>
    %c0_5 = arith.constant 0 : index
    %c0_6 = arith.constant 0 : index
    %5 = vector.load %arg3[%c0_5, %c0_6] : memref<16x1xf32, #tpu.memory_space<vmem>>, vector<16x1xf32>
    %6 = vector.shape_cast %5 : vector<16x1xf32> to vector<16x1xf32>
    %7 = vector.broadcast %6 : vector<16x1xf32> to vector<16x256xf32>
    %c0_7 = arith.constant 0 : index
    %c0_8 = arith.constant 0 : index
    %c0_9 = arith.constant 0 : index
    %8 = vector.load %arg6[%c0_7, %c0_8, %c0_9] : memref<1x16x256xf32, #tpu.memory_space<vmem>>, vector<1x16x256xf32>
    %9 = vector.shape_cast %8 : vector<1x16x256xf32> to vector<16x256xf32>
    %10 = vector.shape_cast %7 : vector<16x256xf32> to vector<1x16x256xf32>
    tpu.vector_store %arg6[%c0_7, %c0_8, %c0_9], %10 {strides = array<i32>} : memref<1x16x256xf32, #tpu.memory_space<vmem>>, vector<1x16x256xf32>,
    %11 = vector.extract_strided_slice %4 {offsets = [0, 0], sizes = [8, 256], strides = [1, 1]} : vector<8x512xbf16> to vector<8x256xbf16>
    %c0_10 = arith.constant 0 : index
    %c0_11 = arith.constant 0 : index
    %c0_12 = arith.constant 0 : index
    %12 = vector.load %arg6[%c0_10, %c0_11, %c0_12] : memref<1x16x256xf32, #tpu.memory_space<vmem>>, vector<1x16x256xf32>
    %13 = vector.shape_cast %12 : vector<1x16x256xf32> to vector<16x256xf32>
    %c0_13 = arith.constant 0 : index
    %c0_14 = arith.constant 0 : index
    %c0_15 = arith.constant 0 : index
    %14 = vector.load %arg2[%c0_13, %c0_14, %c0_15] : memref<9x16x8xbf16, #tpu.memory_space<vmem>>, vector<1x16x8xbf16>
    %15 = vector.shape_cast %14 : vector<1x16x8xbf16> to vector<16x8xbf16>
    %cst = arith.constant dense<0.000000e+00> : vector<16x256xf32>
    %16 = tpu.matmul %15, %11, %cst {dimension_numbers = #tpu.dot_dimension_numbers<[1], [0], [0], [1], [0, 0, 1, 1], [], []>} : vector<16x8xbf16>, vector<8x256xbf16>, vector<16x256xf32> -> vector<16x256xf32>
    %17 = arith.addf %13, %16 : vector<16x256xf32>
    %c0_16 = arith.constant 0 : index
    %c0_17 = arith.constant 0 : index
    %c0_18 = arith.constant 0 : index
    %18 = vector.load %arg6[%c0_16, %c0_17, %c0_18] : memref<1x16x256xf32, #tpu.memory_space<vmem>>, vector<1x16x256xf32>
    %19 = vector.shape_cast %18 : vector<1x16x256xf32> to vector<16x256xf32>
    %20 = vector.shape_cast %17 : vector<16x256xf32> to vector<1x16x256xf32>
    tpu.vector_store %arg6[%c0_16, %c0_17, %c0_18], %20 {strides = array<i32>} : memref<1x16x256xf32, #tpu.memory_space<vmem>>, vector<1x16x256xf32>,
    %21 = vector.extract_strided_slice %4 {offsets = [0, 1], sizes = [8, 256], strides = [1, 1]} : vector<8x512xbf16> to vector<8x256xbf16>
    %c0_19 = arith.constant 0 : index
    %c0_20 = arith.constant 0 : index
    %c0_21 = arith.constant 0 : index
    %22 = vector.load %arg6[%c0_19, %c0_20, %c0_21] : memref<1x16x256xf32, #tpu.memory_space<vmem>>, vector<1x16x256xf32>
    %23 = vector.shape_cast %22 : vector<1x16x256xf32> to vector<16x256xf32>
    %c1 = arith.constant 1 : index
    %c0_22 = arith.constant 0 : index
    %c0_23 = arith.constant 0 : index
    %24 = vector.load %arg2[%c1, %c0_22, %c0_23] : memref<9x16x8xbf16, #tpu.memory_space<vmem>>, vector<1x16x8xbf16>
    %25 = vector.shape_cast %24 : vector<1x16x8xbf16> to vector<16x8xbf16>
    %cst_24 = arith.constant dense<0.000000e+00> : vector<16x256xf32>
    %26 = tpu.matmul %25, %21, %cst_24 {dimension_numbers = #tpu.dot_dimension_numbers<[1], [0], [0], [1], [0, 0, 1, 1], [], []>} : vector<16x8xbf16>, vector<8x256xbf16>, vector<16x256xf32> -> vector<16x256xf32>
    %27 = arith.addf %23, %26 : vector<16x256xf32>
    %c0_25 = arith.constant 0 : index
    %c0_26 = arith.constant 0 : index
    %c0_27 = arith.constant 0 : index
    %28 = vector.load %arg6[%c0_25, %c0_26, %c0_27] : memref<1x16x256xf32, #tpu.memory_space<vmem>>, vector<1x16x256xf32>
    %29 = vector.shape_cast %28 : vector<1x16x256xf32> to vector<16x256xf32>
    %30 = vector.shape_cast %27 : vector<16x256xf32> to vector<1x16x256xf32>
    tpu.vector_store %arg6[%c0_25, %c0_26, %c0_27], %30 {strides = array<i32>} : memref<1x16x256xf32, #tpu.memory_space<vmem>>, vector<1x16x256xf32>,
    %31 = vector.extract_strided_slice %4 {offsets = [0, 2], sizes = [8, 256], strides = [1, 1]} : vector<8x512xbf16> to vector<8x256xbf16>
    %c0_28 = arith.constant 0 : index
    %c0_29 = arith.constant 0 : index
    %c0_30 = arith.constant 0 : index
    %32 = vector.load %arg6[%c0_28, %c0_29, %c0_30] : memref<1x16x256xf32, #tpu.memory_space<vmem>>, vector<1x16x256xf32>
    %33 = vector.shape_cast %32 : vector<1x16x256xf32> to vector<16x256xf32>
    %c2 = arith.constant 2 : index
    %c0_31 = arith.constant 0 : index
    %c0_32 = arith.constant 0 : index
    %34 = vector.load %arg2[%c2, %c0_31, %c0_32] : memref<9x16x8xbf16, #tpu.memory_space<vmem>>, vector<1x16x8xbf16>
    %35 = vector.shape_cast %34 : vector<1x16x8xbf16> to vector<16x8xbf16>
    %cst_33 = arith.constant dense<0.000000e+00> : vector<16x256xf32>
    %36 = tpu.matmul %35, %31, %cst_33 {dimension_numbers = #tpu.dot_dimension_numbers<[1], [0], [0], [1], [0, 0, 1, 1], [], []>} : vector<16x8xbf16>, vector<8x256xbf16>, vector<16x256xf32> -> vector<16x256xf32>
    %37 = arith.addf %33, %36 : vector<16x256xf32>
    %c0_34 = arith.constant 0 : index
    %c0_35 = arith.constant 0 : index
    %c0_36 = arith.constant 0 : index
    %38 = vector.load %arg6[%c0_34, %c0_35, %c0_36] : memref<1x16x256xf32, #tpu.memory_space<vmem>>, vector<1x16x256xf32>
    %39 = vector.shape_cast %38 : vector<1x16x256xf32> to vector<16x256xf32>
    %40 = vector.shape_cast %37 : vector<16x256xf32> to vector<1x16x256xf32>
    tpu.vector_store %arg6[%c0_34, %c0_35, %c0_36], %40 {strides = array<i32>} : memref<1x16x256xf32, #tpu.memory_space<vmem>>, vector<1x16x256xf32>,
    %41 = vector.extract_strided_slice %4 {offsets = [0, 18], sizes = [8, 256], strides = [1, 1]} : vector<8x512xbf16> to vector<8x256xbf16>
    %c0_37 = arith.constant 0 : index
    %c0_38 = arith.constant 0 : index
    %c0_39 = arith.constant 0 : index
    %42 = vector.load %arg6[%c0_37, %c0_38, %c0_39] : memref<1x16x256xf32, #tpu.memory_space<vmem>>, vector<1x16x256xf32>
    %43 = vector.shape_cast %42 : vector<1x16x256xf32> to vector<16x256xf32>
    %c3 = arith.constant 3 : index
    %c0_40 = arith.constant 0 : index
    %c0_41 = arith.constant 0 : index
    %44 = vector.load %arg2[%c3, %c0_40, %c0_41] : memref<9x16x8xbf16, #tpu.memory_space<vmem>>, vector<1x16x8xbf16>
    %45 = vector.shape_cast %44 : vector<1x16x8xbf16> to vector<16x8xbf16>
    %cst_42 = arith.constant dense<0.000000e+00> : vector<16x256xf32>
    %46 = tpu.matmul %45, %41, %cst_42 {dimension_numbers = #tpu.dot_dimension_numbers<[1], [0], [0], [1], [0, 0, 1, 1], [], []>} : vector<16x8xbf16>, vector<8x256xbf16>, vector<16x256xf32> -> vector<16x256xf32>
    %47 = arith.addf %43, %46 : vector<16x256xf32>
    %c0_43 = arith.constant 0 : index
    %c0_44 = arith.constant 0 : index
    %c0_45 = arith.constant 0 : index
    %48 = vector.load %arg6[%c0_43, %c0_44, %c0_45] : memref<1x16x256xf32, #tpu.memory_space<vmem>>, vector<1x16x256xf32>
    %49 = vector.shape_cast %48 : vector<1x16x256xf32> to vector<16x256xf32>
    %50 = vector.shape_cast %47 : vector<16x256xf32> to vector<1x16x256xf32>
    tpu.vector_store %arg6[%c0_43, %c0_44, %c0_45], %50 {strides = array<i32>} : memref<1x16x256xf32, #tpu.memory_space<vmem>>, vector<1x16x256xf32>,
    %51 = vector.extract_strided_slice %4 {offsets = [0, 19], sizes = [8, 256], strides = [1, 1]} : vector<8x512xbf16> to vector<8x256xbf16>
    %c0_46 = arith.constant 0 : index
    %c0_47 = arith.constant 0 : index
    %c0_48 = arith.constant 0 : index
    %52 = vector.load %arg6[%c0_46, %c0_47, %c0_48] : memref<1x16x256xf32, #tpu.memory_space<vmem>>, vector<1x16x256xf32>
    %53 = vector.shape_cast %52 : vector<1x16x256xf32> to vector<16x256xf32>
    %c4 = arith.constant 4 : index
    %c0_49 = arith.constant 0 : index
    %c0_50 = arith.constant 0 : index
    %54 = vector.load %arg2[%c4, %c0_49, %c0_50] : memref<9x16x8xbf16, #tpu.memory_space<vmem>>, vector<1x16x8xbf16>
    %55 = vector.shape_cast %54 : vector<1x16x8xbf16> to vector<16x8xbf16>
    %cst_51 = arith.constant dense<0.000000e+00> : vector<16x256xf32>
    %56 = tpu.matmul %55, %51, %cst_51 {dimension_numbers = #tpu.dot_dimension_numbers<[1], [0], [0], [1], [0, 0, 1, 1], [], []>} : vector<16x8xbf16>, vector<8x256xbf16>, vector<16x256xf32> -> vector<16x256xf32>
    %57 = arith.addf %53, %56 : vector<16x256xf32>
    %c0_52 = arith.constant 0 : index
    %c0_53 = arith.constant 0 : index
    %c0_54 = arith.constant 0 : index
    %58 = vector.load %arg6[%c0_52, %c0_53, %c0_54] : memref<1x16x256xf32, #tpu.memory_space<vmem>>, vector<1x16x256xf32>
    %59 = vector.shape_cast %58 : vector<1x16x256xf32> to vector<16x256xf32>
    %60 = vector.shape_cast %57 : vector<16x256xf32> to vector<1x16x256xf32>
    tpu.vector_store %arg6[%c0_52, %c0_53, %c0_54], %60 {strides = array<i32>} : memref<1x16x256xf32, #tpu.memory_space<vmem>>, vector<1x16x256xf32>,
    %61 = vector.extract_strided_slice %4 {offsets = [0, 20], sizes = [8, 256], strides = [1, 1]} : vector<8x512xbf16> to vector<8x256xbf16>
    %c0_55 = arith.constant 0 : index
    %c0_56 = arith.constant 0 : index
    %c0_57 = arith.constant 0 : index
    %62 = vector.load %arg6[%c0_55, %c0_56, %c0_57] : memref<1x16x256xf32, #tpu.memory_space<vmem>>, vector<1x16x256xf32>
    %63 = vector.shape_cast %62 : vector<1x16x256xf32> to vector<16x256xf32>
    %c5 = arith.constant 5 : index
    %c0_58 = arith.constant 0 : index
    %c0_59 = arith.constant 0 : index
    %64 = vector.load %arg2[%c5, %c0_58, %c0_59] : memref<9x16x8xbf16, #tpu.memory_space<vmem>>, vector<1x16x8xbf16>
    %65 = vector.shape_cast %64 : vector<1x16x8xbf16> to vector<16x8xbf16>
    %cst_60 = arith.constant dense<0.000000e+00> : vector<16x256xf32>
    %66 = tpu.matmul %65, %61, %cst_60 {dimension_numbers = #tpu.dot_dimension_numbers<[1], [0], [0], [1], [0, 0, 1, 1], [], []>} : vector<16x8xbf16>, vector<8x256xbf16>, vector<16x256xf32> -> vector<16x256xf32>
    %67 = arith.addf %63, %66 : vector<16x256xf32>
    %c0_61 = arith.constant 0 : index
    %c0_62 = arith.constant 0 : index
    %c0_63 = arith.constant 0 : index
    %68 = vector.load %arg6[%c0_61, %c0_62, %c0_63] : memref<1x16x256xf32, #tpu.memory_space<vmem>>, vector<1x16x256xf32>
    %69 = vector.shape_cast %68 : vector<1x16x256xf32> to vector<16x256xf32>
    %70 = vector.shape_cast %67 : vector<16x256xf32> to vector<1x16x256xf32>
    tpu.vector_store %arg6[%c0_61, %c0_62, %c0_63], %70 {strides = array<i32>} : memref<1x16x256xf32, #tpu.memory_space<vmem>>, vector<1x16x256xf32>,
    %71 = vector.extract_strided_slice %4 {offsets = [0, 36], sizes = [8, 256], strides = [1, 1]} : vector<8x512xbf16> to vector<8x256xbf16>
    %c0_64 = arith.constant 0 : index
    %c0_65 = arith.constant 0 : index
    %c0_66 = arith.constant 0 : index
    %72 = vector.load %arg6[%c0_64, %c0_65, %c0_66] : memref<1x16x256xf32, #tpu.memory_space<vmem>>, vector<1x16x256xf32>
    %73 = vector.shape_cast %72 : vector<1x16x256xf32> to vector<16x256xf32>
    %c6 = arith.constant 6 : index
    %c0_67 = arith.constant 0 : index
    %c0_68 = arith.constant 0 : index
    %74 = vector.load %arg2[%c6, %c0_67, %c0_68] : memref<9x16x8xbf16, #tpu.memory_space<vmem>>, vector<1x16x8xbf16>
    %75 = vector.shape_cast %74 : vector<1x16x8xbf16> to vector<16x8xbf16>
    %cst_69 = arith.constant dense<0.000000e+00> : vector<16x256xf32>
    %76 = tpu.matmul %75, %71, %cst_69 {dimension_numbers = #tpu.dot_dimension_numbers<[1], [0], [0], [1], [0, 0, 1, 1], [], []>} : vector<16x8xbf16>, vector<8x256xbf16>, vector<16x256xf32> -> vector<16x256xf32>
    %77 = arith.addf %73, %76 : vector<16x256xf32>
    %c0_70 = arith.constant 0 : index
    %c0_71 = arith.constant 0 : index
    %c0_72 = arith.constant 0 : index
    %78 = vector.load %arg6[%c0_70, %c0_71, %c0_72] : memref<1x16x256xf32, #tpu.memory_space<vmem>>, vector<1x16x256xf32>
    %79 = vector.shape_cast %78 : vector<1x16x256xf32> to vector<16x256xf32>
    %80 = vector.shape_cast %77 : vector<16x256xf32> to vector<1x16x256xf32>
    tpu.vector_store %arg6[%c0_70, %c0_71, %c0_72], %80 {strides = array<i32>} : memref<1x16x256xf32, #tpu.memory_space<vmem>>, vector<1x16x256xf32>,
    %81 = vector.extract_strided_slice %4 {offsets = [0, 37], sizes = [8, 256], strides = [1, 1]} : vector<8x512xbf16> to vector<8x256xbf16>
    %c0_73 = arith.constant 0 : index
    %c0_74 = arith.constant 0 : index
    %c0_75 = arith.constant 0 : index
    %82 = vector.load %arg6[%c0_73, %c0_74, %c0_75] : memref<1x16x256xf32, #tpu.memory_space<vmem>>, vector<1x16x256xf32>
    %83 = vector.shape_cast %82 : vector<1x16x256xf32> to vector<16x256xf32>
    %c7 = arith.constant 7 : index
    %c0_76 = arith.constant 0 : index
    %c0_77 = arith.constant 0 : index
    %84 = vector.load %arg2[%c7, %c0_76, %c0_77] : memref<9x16x8xbf16, #tpu.memory_space<vmem>>, vector<1x16x8xbf16>
    %85 = vector.shape_cast %84 : vector<1x16x8xbf16> to vector<16x8xbf16>
    %cst_78 = arith.constant dense<0.000000e+00> : vector<16x256xf32>
    %86 = tpu.matmul %85, %81, %cst_78 {dimension_numbers = #tpu.dot_dimension_numbers<[1], [0], [0], [1], [0, 0, 1, 1], [], []>} : vector<16x8xbf16>, vector<8x256xbf16>, vector<16x256xf32> -> vector<16x256xf32>
    %87 = arith.addf %83, %86 : vector<16x256xf32>
    %c0_79 = arith.constant 0 : index
    %c0_80 = arith.constant 0 : index
    %c0_81 = arith.constant 0 : index
    %88 = vector.load %arg6[%c0_79, %c0_80, %c0_81] : memref<1x16x256xf32, #tpu.memory_space<vmem>>, vector<1x16x256xf32>
    %89 = vector.shape_cast %88 : vector<1x16x256xf32> to vector<16x256xf32>
    %90 = vector.shape_cast %87 : vector<16x256xf32> to vector<1x16x256xf32>
    tpu.vector_store %arg6[%c0_79, %c0_80, %c0_81], %90 {strides = array<i32>} : memref<1x16x256xf32, #tpu.memory_space<vmem>>, vector<1x16x256xf32>,
    %91 = vector.extract_strided_slice %4 {offsets = [0, 38], sizes = [8, 256], strides = [1, 1]} : vector<8x512xbf16> to vector<8x256xbf16>
    %c0_82 = arith.constant 0 : index
    %c0_83 = arith.constant 0 : index
    %c0_84 = arith.constant 0 : index
    %92 = vector.load %arg6[%c0_82, %c0_83, %c0_84] : memref<1x16x256xf32, #tpu.memory_space<vmem>>, vector<1x16x256xf32>
    %93 = vector.shape_cast %92 : vector<1x16x256xf32> to vector<16x256xf32>
    %c8 = arith.constant 8 : index
    %c0_85 = arith.constant 0 : index
    %c0_86 = arith.constant 0 : index
    %94 = vector.load %arg2[%c8, %c0_85, %c0_86] : memref<9x16x8xbf16, #tpu.memory_space<vmem>>, vector<1x16x8xbf16>
    %95 = vector.shape_cast %94 : vector<1x16x8xbf16> to vector<16x8xbf16>
    %cst_87 = arith.constant dense<0.000000e+00> : vector<16x256xf32>
    %96 = tpu.matmul %95, %91, %cst_87 {dimension_numbers = #tpu.dot_dimension_numbers<[1], [0], [0], [1], [0, 0, 1, 1], [], []>} : vector<16x8xbf16>, vector<8x256xbf16>, vector<16x256xf32> -> vector<16x256xf32>
    %97 = arith.addf %93, %96 : vector<16x256xf32>
    %c0_88 = arith.constant 0 : index
    %c0_89 = arith.constant 0 : index
    %c0_90 = arith.constant 0 : index
    %98 = vector.load %arg6[%c0_88, %c0_89, %c0_90] : memref<1x16x256xf32, #tpu.memory_space<vmem>>, vector<1x16x256xf32>
    %99 = vector.shape_cast %98 : vector<1x16x256xf32> to vector<16x256xf32>
    %100 = vector.shape_cast %97 : vector<16x256xf32> to vector<1x16x256xf32>
    tpu.vector_store %arg6[%c0_88, %c0_89, %c0_90], %100 {strides = array<i32>} : memref<1x16x256xf32, #tpu.memory_space<vmem>>, vector<1x16x256xf32>,
    return
  }
  func.func @transform_0(%arg0: i32, %arg1: i32) -> (i32, i32, i32) {
    %c0_i32 = arith.constant 0 : i32
    %c0_i32_0 = arith.constant 0 : i32
    %c0_i32_1 = arith.constant 0 : i32
    %c0_i32_2 = arith.constant 0 : i32
    return %c0_i32, %c0_i32_0, %c0_i32_1 : i32, i32, i32
  }
  func.func @transform_1(%arg0: i32, %arg1: i32) -> (i32, i32) {
    %c0_i32 = arith.constant 0 : i32
    %c0_i32_0 = arith.constant 0 : i32
    %c0_i32_1 = arith.constant 0 : i32
    return %c0_i32, %c0_i32_0 : i32, i32
  }
  func.func @transform_2(%arg0: i32, %arg1: i32) -> (i32, i32, i32) {
    %c0_i32 = arith.constant 0 : i32
    %c0_i32_0 = arith.constant 0 : i32
    return %arg0, %c0_i32, %arg1 : i32, i32, i32
  }
  func.func @transform_3(%arg0: i32, %arg1: i32) -> (i32, i32, i32) {
    %c1_i32 = arith.constant 1 : i32
    %0 = arith.addi %arg1, %c1_i32 : i32
    %c0_i32 = arith.constant 0 : i32
    %c0_i32_0 = arith.constant 0 : i32
    return %arg0, %c0_i32, %0 : i32, i32, i32
  }
  func.func @transform_4(%arg0: i32, %arg1: i32) -> (i32, i32, i32) {
    %c0_i32 = arith.constant 0 : i32
    %c0_i32_0 = arith.constant 0 : i32
    return %arg0, %c0_i32, %arg1 : i32, i32, i32
  }
}

</mosaic_0001>

<llo_original>
// kernel: complex_conv2d.1
$region0: #{complex_conv2d.1}
  #allocation0 [shape = 'u32[]', space=smem, size = 0x4, offset = 0x4, fixed_abs, tag = 'smem constant byte address 0x4 - core index']
  #allocation1 [shape = 'u32[144,128]{1,0:T(1,128)}', space=vmem, size = 0x12000, scoped, tag = 'internal scratch']
  %s0 = inlined_call_operand.vmem [shape: bf16[9,16,8], index: 0, kind: input, shape index: {}]
  %s1 = inlined_call_operand.vmem [shape: f32[16,1], index: 1, kind: input, shape index: {}]
  %s2 = inlined_call_operand.vmem [shape: bf16[2,8,774], index: 2, kind: input, shape index: {}, may-alias: {2,3}]
  %s3 = inlined_call_operand.vmem [shape: bf16[2,8,774], index: 3, kind: input, shape index: {}, may-alias: {2,3}]
  %s4 = inlined_call_operand.vmem [shape: f32[2,16,512], index: 4, kind: output, shape index: {}]
  %s5 = sld [smem:[#allocation0]]
  $region68: #{complex_conv2d.1} parent=0
    _
  %s7 = ssub.s32 1, %s5
  %s8 = scalar_select 0, %s7, %s5
  $region1: #{complex_conv2d.1} parent=0
    #allocation2 [shape = 'u8[32768]{0}', space=vmem, size = 0x8000, scoped, tag = 'output window, operand 0']
    loop: start=0, step=1, limit=6
    $region2: #{complex_conv2d.1} parent=1 // loop_pre_header
      _
    $region3: #{complex_conv2d.1} parent=1 // loop_header
      %s10 = sphi 0, %s14
      %p11 = scmp.ge.s32.totalorder %s10, 6
      %s17 = sphi 0, %s29
      %s18 = sphi 0, %s25
      %s19 = sphi 0, %s17
      %s20 = sphi 0, %s18
      %s21 = sphi 0, %s19
      %s22 = sphi 0, %s20
      %s30 = sphi 0, %s30
      %s32 = sphi 0, %s30
      %s33 = sphi 0, %s32
      %s47 = sphi 0, %s33
      %s51 = sphi 0, %s51
      %s53 = sphi 0, %s51
      %s54 = sphi 0, %s53
      %s68 = sphi 0, %s54
      %s76 = sphi 0, %s78
      %s79 = sphi 0, %s76
      %s80 = sphi 0, %s79
      %s96 = sphi 0, %s80
      %s106 = sphi 0, %s108
      %s109 = sphi 0, %s106
      %s110 = sphi 0, %s109
      %s126 = sphi 0, %s110
      %s134 = sphi 0, %s136
      %s137 = sphi 0, %s134
      %s138 = sphi 0, %s137
      %s154 = sphi 0, %s138
    $region4: #{complex_conv2d.1} parent=1 // loop_header_branch
      %13 = sbr.rel (%p11) target = $region8
    $region5: #{complex_conv2d.1} parent=1 // loop_body
      %s15 = ssub.s32 %s10, 1
      %s16 = ssub.s32 %s10, 2
      %s23 = sadd.s32 1, %s18
      %p24 = scmp.ge.s32.totalorder %s23, 2
      %s25 = scalar_select %p24, 0, %s23
      %s26 = sadd.s32 1, %s17
      %s27 = scalar_select %p24, %s26, %s17
      %p28 = scmp.ge.s32.totalorder %s27, 2
      %s29 = scalar_select %p28, 0, %s27
      %s31 = sadd.s32 %s30, 1
      %p34 = scmp.eq.s32.totalorder %s10, 3
      %p35 = scmp.ne.s32.totalorder %s30, %s32
      %p36 = scmp.eq.s32.totalorder %s10, 0
      %p37 = por %p35, %p36
      %p38 = scmp.ne.s32.totalorder %s30, %s32
      %p39 = scmp.eq.s32.totalorder %s15, 3
      %p40 = por %p38, %p39
      %p41 = scmp.ne.s32.totalorder %s32, %s33
      %p42 = scmp.eq.s32.totalorder %s15, 0
      %p43 = por %p41, %p42
      %p44 = scmp.ne.s32.totalorder %s32, %s33
      %p45 = scmp.eq.s32.totalorder %s16, 3
      %p46 = por %p44, %p45
      %p48 = scmp.ne.s32.totalorder %s33, %s47
      %p49 = scmp.eq.s32.totalorder %s16, 0
      %p50 = por %p48, %p49
      %s52 = sadd.s32 %s51, 1
      %p55 = scmp.eq.s32.totalorder %s10, 3
      %p56 = scmp.ne.s32.totalorder %s51, %s53
      %p57 = scmp.eq.s32.totalorder %s10, 0
      %p58 = por %p56, %p57
      %p59 = scmp.ne.s32.totalorder %s51, %s53
      %p60 = scmp.eq.s32.totalorder %s15, 3
      %p61 = por %p59, %p60
      %p62 = scmp.ne.s32.totalorder %s53, %s54
      %p63 = scmp.eq.s32.totalorder %s15, 0
      %p64 = por %p62, %p63
      %p65 = scmp.ne.s32.totalorder %s53, %s54
      %p66 = scmp.eq.s32.totalorder %s16, 3
      %p67 = por %p65, %p66
      %p69 = scmp.ne.s32.totalorder %s54, %s68
      %p70 = scmp.eq.s32.totalorder %s16, 0
      %p71 = por %p69, %p70
      %s72 = ssub.s32 %s17, %s29
      %s73 = ssub.s32 %s18, %s25
      %s74 = sor.u32 %s72, %s73
      %p75 = scmp.eq.s32.totalorder %s74, 0
      %s77 = sadd.s32 %s76, 1
      %s78 = scalar_select %p75, %s76, %s77
      %p81 = pneg %p75
      %p82 = scmp.eq.s32.totalorder %s10, 3
      %p83 = por %p81, %p82
      %p84 = scmp.ne.s32.totalorder %s76, %s79
      %p85 = scmp.eq.s32.totalorder %s10, 0
      %p86 = por %p84, %p85
      %p87 = scmp.ne.s32.totalorder %s76, %s79
      %p88 = scmp.eq.s32.totalorder %s15, 3
      %p89 = por %p87, %p88
      %p90 = scmp.ne.s32.totalorder %s79, %s80
      %p91 = scmp.eq.s32.totalorder %s15, 0
      %p92 = por %p90, %p91
      %p93 = scmp.ne.s32.totalorder %s79, %s80
      %p94 = scmp.eq.s32.totalorder %s16, 3
      %p95 = por %p93, %p94
      %p97 = scmp.ne.s32.totalorder %s80, %s96
      %p98 = scmp.eq.s32.totalorder %s16, 0
      %p99 = por %p97, %p98
      %s100 = sadd.s32 %s18, 1
      %s101 = sadd.s32 %s25, 1
      %s102 = ssub.s32 %s17, %s29
      %s103 = ssub.s32 %s100, %s101
      %s104 = sor.u32 %s102, %s103
      %p105 = scmp.eq.s32.totalorder %s104, 0
      %s107 = sadd.s32 %s106, 1
      %s108 = scalar_select %p105, %s106, %s107
      %p111 = pneg %p105
      %p112 = scmp.eq.s32.totalorder %s10, 3
      %p113 = por %p111, %p112
      %p114 = scmp.ne.s32.totalorder %s106, %s109
      %p115 = scmp.eq.s32.totalorder %s10, 0
      %p116 = por %p114, %p115
      %p117 = scmp.ne.s32.totalorder %s106, %s109
      %p118 = scmp.eq.s32.totalorder %s15, 3
      %p119 = por %p117, %p118
      %p120 = scmp.ne.s32.totalorder %s109, %s110
      %p121 = scmp.eq.s32.totalorder %s15, 0
      %p122 = por %p120, %p121
      %p123 = scmp.ne.s32.totalorder %s109, %s110
      %p124 = scmp.eq.s32.totalorder %s16, 3
      %p125 = por %p123, %p124
      %p127 = scmp.ne.s32.totalorder %s110, %s126
      %p128 = scmp.eq.s32.totalorder %s16, 0
      %p129 = por %p127, %p128
      %s130 = ssub.s32 %s17, %s29
      %s131 = ssub.s32 %s18, %s25
      %s132 = sor.u32 %s130, %s131
      %p133 = scmp.eq.s32.totalorder %s132, 0
      %s135 = sadd.s32 %s134, 1
      %s136 = scalar_select %p133, %s134, %s135
      %p139 = pneg %p133
      %p140 = scmp.eq.s32.totalorder %s10, 3
      %p141 = por %p139, %p140
      %p142 = scmp.ne.s32.totalorder %s134, %s137
      %p143 = scmp.eq.s32.totalorder %s10, 0
      %p144 = por %p142, %p143
      %p145 = scmp.ne.s32.totalorder %s134, %s137
      %p146 = scmp.eq.s32.totalorder %s15, 3
      %p147 = por %p145, %p146
      %p148 = scmp.ne.s32.totalorder %s137, %s138
      %p149 = scmp.eq.s32.totalorder %s15, 0
      %p150 = por %p148, %p149
      %p151 = scmp.ne.s32.totalorder %s137, %s138
      %p152 = scmp.eq.s32.totalorder %s16, 3
      %p153 = por %p151, %p152
      %p155 = scmp.ne.s32.totalorder %s138, %s154
      %p156 = scmp.eq.s32.totalorder %s16, 0
      %p157 = por %p155, %p156
      %p158 = scmp.le.s32.totalorder 1, %s10
      %p159 = scmp.lt.s32.totalorder %s10, 5
      %p160 = pnand %p158, %p159
      %p161 = pneg %p160
      // Predicated region
      $region9: #{complex_conv2d.1} parent=5 // pred_check
        _
      $region10: #{complex_conv2d.1} parent=5 // pred_check_branch
        %163 = sbr.rel (%p160) target = $region12
      $region11: #{complex_conv2d.1} parent=5 // pred_region
        %s164 = ssub.s32 %s10, 1
        // Predicated region
        $region13: #{complex_conv2d.1} parent=11 // pred_check
          %p165 = pneg %p43
        $region14: #{complex_conv2d.1} parent=11 // pred_check_branch
          %167 = sbr.rel (%p165) target = $region16
        $region15: #{complex_conv2d.1} parent=11 // pred_region
          _
        $region16: #{complex_conv2d.1} parent=11 // pred_fallthru
          _
        // Predicated region
        $region17: #{complex_conv2d.1} parent=11 // pred_check
          %p168 = pneg %p64
        $region18: #{complex_conv2d.1} parent=11 // pred_check_branch
          %170 = sbr.rel (%p168) target = $region20
        $region19: #{complex_conv2d.1} parent=11 // pred_region
          _
        $region20: #{complex_conv2d.1} parent=11 // pred_fallthru
          _
      $region12: #{complex_conv2d.1} parent=5 // pred_fallthru
        _
      %p171 = scmp.lt.s32.totalorder %s10, 4
      // Predicated region
      $region21: #{complex_conv2d.1} parent=5 // pred_check
        %p172 = pneg %p171
      $region22: #{complex_conv2d.1} parent=5 // pred_check_branch
        %174 = sbr.rel (%p172) target = $region24
      $region23: #{complex_conv2d.1} parent=5 // pred_region
        // Predicated region
        $region25: #{complex_conv2d.1} parent=23 // pred_check
          %p175 = pneg %p86
        $region26: #{complex_conv2d.1} parent=23 // pred_check_branch
          %177 = sbr.rel (%p175) target = $region28
        $region27: #{complex_conv2d.1} parent=23 // pred_region
          %s178 = smul.u32 2, %s18
          %s179 = ssub.s32 7, %s178
          %p180 = scmp.lt.s32.totalorder %s179, 2
          %s181 = scalar_select %p180, %s179, 2
          %s182 = smul.u32 64, %s181
          %p183 = scmp.lt.s32.totalorder %s17, 1
          %s184 = scalar_select %p183, %s17, 1
          %p185 = scmp.lt.s32.totalorder %s178, 6
          %s186 = scalar_select %p185, %s178, 6
          %s187 = smul.addr %s184, 7
          %s188 = sadd.s32 %s186, %s187
          %s189 = smul.addr %s188, 4
          %s190 = scalar_lea.vmem %s2, %s189
          %s191 = smul.u32 2, %s18
          %s192 = ssub.s32 7, %s191
          %p193 = scmp.lt.s32.totalorder %s192, 2
          %s194 = scalar_select %p193, %s192, 2
          %s195 = smul.u32 64, %s194
        $region28: #{complex_conv2d.1} parent=23 // pred_fallthru
          _
        // Predicated region
        $region29: #{complex_conv2d.1} parent=23 // pred_check
          %p196 = pneg %p116
        $region30: #{complex_conv2d.1} parent=23 // pred_check_branch
          %198 = sbr.rel (%p196) target = $region32
        $region31: #{complex_conv2d.1} parent=23 // pred_region
          %s199 = sadd.s32 %s18, 1
          %s200 = smul.u32 2, %s199
          %s201 = ssub.s32 7, %s200
          %p202 = scmp.lt.s32.totalorder %s201, 2
          %s203 = scalar_select %p202, %s201, 2
          %s204 = smul.u32 64, %s203
          %p205 = scmp.lt.s32.totalorder %s17, 1
          %s206 = scalar_select %p205, %s17, 1
          %p207 = scmp.lt.s32.totalorder %s200, 6
          %s208 = scalar_select %p207, %s200, 6
          %s209 = smul.addr %s206, 7
          %s210 = sadd.s32 %s208, %s209
          %s211 = smul.addr %s210, 4
          %s212 = scalar_lea.vmem %s3, %s211
          %s213 = sadd.s32 %s18, 1
          %s214 = smul.u32 2, %s213
          %s215 = ssub.s32 7, %s214
          %p216 = scmp.lt.s32.totalorder %s215, 2
          %s217 = scalar_select %p216, %s215, 2
          %s218 = smul.u32 64, %s217
        $region32: #{complex_conv2d.1} parent=23 // pred_fallthru
          _
      $region24: #{complex_conv2d.1} parent=5 // pred_fallthru
        _
      %p219 = scmp.le.s32.totalorder 1, %s10
      %p220 = scmp.lt.s32.totalorder %s10, 5
      %p221 = pnand %p219, %p220
      %p222 = pneg %p221
      // Predicated region
      $region33: #{complex_conv2d.1} parent=5 // pred_check
        _
      $region34: #{complex_conv2d.1} parent=5 // pred_check_branch
        %224 = sbr.rel (%p221) target = $region36
      $region35: #{complex_conv2d.1} parent=5 // pred_region
        %s225 = ssub.s32 %s10, 1
        %p226 = pneg %p43
        %p227 = pneg %p40
        %p228 = pneg %p64
        %p229 = pneg %p61
        %s230 = smul.u32 2, %s20
        %s231 = ssub.s32 7, %s230
        %p232 = scmp.lt.s32.totalorder %s231, 2
        %s233 = scalar_select %p232, %s231, 2
        %s234 = smul.u32 64, %s233
        %p235 = scmp.lt.s32.totalorder %s19, 1
        %s236 = scalar_select %p235, %s19, 1
        %p237 = scmp.lt.s32.totalorder %s230, 6
        %s238 = scalar_select %p237, %s230, 6
        %s239 = smul.addr %s236, 7
        %s240 = sadd.s32 %s238, %s239
        %s241 = smul.addr %s240, 4
        %s242 = scalar_lea.vmem %s2, %s241
        %p243 = pneg %p92
        %p244 = pneg %p89
        %s245 = sadd.s32 %s20, 1
        %s246 = smul.u32 2, %s245
        %s247 = ssub.s32 7, %s246
        %p248 = scmp.lt.s32.totalorder %s247, 2
        %s249 = scalar_select %p248, %s247, 2
        %s250 = smul.u32 64, %s249
        %p251 = scmp.lt.s32.totalorder %s19, 1
        %s252 = scalar_select %p251, %s19, 1
        %p253 = scmp.lt.s32.totalorder %s246, 6
        %s254 = scalar_select %p253, %s246, 6
        %s255 = smul.addr %s252, 7
        %s256 = sadd.s32 %s254, %s255
        %s257 = smul.addr %s256, 4
        %s258 = scalar_lea.vmem %s3, %s257
        %p259 = pneg %p122
        %p260 = pneg %p119
        %p261 = pneg %p150
        %p262 = pneg %p147
        %s263 = sand.u32 %s137, 1
        %s264 = sand.u32 %s137, 1
        %s265 = smul.addr %s264, 32
        %s266 = scalar_lea.vmem [#allocation2], %s265
        %s267 = smul.u32 2, %s20
        %s268 = ssub.s32 7, %s267
        %p269 = scmp.lt.s32.totalorder %s268, 2
        %s270 = scalar_select %p269, %s268, 2
        %s271 = smul.u32 64, %s270
        %p272 = scmp.lt.s32.totalorder %s19, 1
        %s273 = scalar_select %p272, %s19, 1
        %p274 = scmp.lt.s32.totalorder %s267, 6
        %s275 = scalar_select %p274, %s267, 6
        %s276 = smul.addr %s273, 7
        %s277 = sadd.s32 %s275, %s276
        %s278 = smul.addr %s277, 4
        %s279 = scalar_lea.vmem %s2, %s278
        %s280 = smul.u32 2, %s20
        %s281 = ssub.s32 7, %s280
        %p282 = scmp.lt.s32.totalorder %s281, 2
        %s283 = scalar_select %p282, %s281, 2
        %s284 = smul.u32 64, %s283
        %s285 = sadd.s32 %s20, 1
        %s286 = smul.u32 2, %s285
        %s287 = ssub.s32 7, %s286
        %p288 = scmp.lt.s32.totalorder %s287, 2
        %s289 = scalar_select %p288, %s287, 2
        %s290 = smul.u32 64, %s289
        %p291 = scmp.lt.s32.totalorder %s19, 1
        %s292 = scalar_select %p291, %s19, 1
        %p293 = scmp.lt.s32.totalorder %s286, 6
        %s294 = scalar_select %p293, %s286, 6
        %s295 = smul.addr %s292, 7
        %s296 = sadd.s32 %s294, %s295
        %s297 = smul.addr %s296, 4
        %s298 = scalar_lea.vmem %s3, %s297
        %s299 = sadd.s32 %s20, 1
        %s300 = smul.u32 2, %s299
        %s301 = ssub.s32 7, %s300
        %p302 = scmp.lt.s32.totalorder %s301, 2
        %s303 = scalar_select %p302, %s301, 2
        %s304 = smul.u32 64, %s303
        %s305 = smul.u32 2, %s20
        %v307 = vld [vmem:[%s279] sm:$0xff]
        %v308 = vld [vmem:[%s298] sm:$0xff]
        %v310 = vunpack.c.l.b16 %v307
        %v311 = vunpack.c.h.b16 %v307
        %v312 = vpack.c.b16 %v310, %v310
        %v313 = vpack.c.b16 %v311, %v311
        %v315 = vunpack.c.l.b16 %v308
        %v316 = vpack.c.b16 %v315, %v315
        %v317 = vld [vmem:[%s1] sm:$0xff]
        %v318 = vld [vmem:[%s1 + $0x8] sm:$0xff]
        %320 = vset.pattern.permute.xlu0 0
        %321 = vperm.xlu0 %320, %v317
        %v322 = vpop.permute.xlu0 %321
        %325 = vset.pattern.permute.xlu0 0
        %326 = vperm.xlu0 %325, %v318
        %v327 = vpop.permute.xlu0 %326
        %329 = vst [vmem:[%s266] sm:$0xff] %v322
        %330 = vst [vmem:[%s266 + $0x8] sm:$0xff] %v322
        %331 = vst [vmem:[%s266 + $0x10] sm:$0xff] %v327
        %332 = vst [vmem:[%s266 + $0x18] sm:$0xff] %v327
        %v333 = vld [vmem:[%s266] sm:$0xff]
        %v334 = vld [vmem:[%s266 + $0x8] sm:$0xff]
        %v335 = vld [vmem:[%s266 + $0x10] sm:$0xff]
        %v336 = vld [vmem:[%s266 + $0x18] sm:$0xff]
        %v337 = vld [vmem:[%s0] sm:$0xf]
        %v338 = vld [vmem:[%s0 + $0x4] sm:$0xf]
        %v341 = vunpack.c.l.b16 %v337
        %v342 = vunpack.c.l.b16 %v338
        %v343 = vpack.c.b16 %v342, %v341
        %vm344 = vcmask 64512
        %v346 = vsel %vm344, %v343, 0
        %vm348 = vcmask 1043456
        %v350 = vsel %vm348, %v312, 0
        %v353 = vsel %vm348, %v313, 0
        %355 = vmatprep.subr.bf16.mxu0 %v353
        %356 = vmatpush1.bf16.msra.mxu0 %v350
        %357 = vmatprep.subr.bf16.mxu0 0
        %358 = vmatpush1.bf16.msra.mxu0 0
        %359 = vmatprep.subr.bf16.mxu0 0
        %360 = vmatpush1.bf16.msra.mxu0 0
        %361 = vmatprep.subr.bf16.mxu0 0
        %362 = vmatpush1.bf16.msra.mxu0 0
        %363 = vmatprep.subr.bf16.mxu0 0
        %364 = vmatpush1.bf16.msra.mxu0 0
        %365 = vmatprep.subr.bf16.mxu0 0
        %366 = vmatpush1.bf16.msra.mxu0 0
        %367 = vmatprep.subr.bf16.mxu0 0
        %368 = vmatpush1.bf16.msra.mxu0 0
        %369 = vmatprep.subr.bf16.mxu0 0
        %370 = vmatpush1.bf16.msra.mxu0 0
        %371 = vmatprep.subr.bf16.mxu0 0
        %372 = vmatpush1.bf16.msra.mxu0 0
        %373 = vmatprep.subr.bf16.mxu0 0
        %374 = vmatpush1.bf16.msra.mxu0 0
        %375 = vmatprep.subr.bf16.mxu0 0
        %376 = vmatpush1.bf16.msra.mxu0 0
        %377 = vmatprep.subr.bf16.mxu0 0
        %378 = vmatpush1.bf16.msra.mxu0 0
        %379 = vmatprep.subr.bf16.mxu0 0
        %380 = vmatpush1.bf16.msra.mxu0 0
        %381 = vmatprep.subr.bf16.mxu0 0
        %382 = vmatpush1.bf16.msra.mxu0 0
        %383 = vmatprep.subr.bf16.mxu0 0
        %384 = vmatpush1.bf16.msra.mxu0 0
        %385 = vmatprep.subr.bf16.mxu0 0
        %386 = vmatpush1.bf16.msra.mxu0 0
        %387 = vmatprep.mubr.bf16.mxu0 0
        %388 = vmatmul.mubr.bf16.gmra.mrb[0].mxu0 %v346
        %v389 = vpop.f32.mrb[0].mxu0
        %v390 = vadd.f32 0.0, %v389
        %v391 = vpop.f32.mrb[0].mxu0
        %v392 = vadd.f32 0.0, %v391
        %v393 = vpop.f32.mrb[0].mxu0
        %v394 = vadd.f32 0.0, %v393
        %v395 = vpop.f32.mrb[0].mxu0
        %v396 = vadd.f32 0.0, %v395
        %397 = vdwg.mxu0
        %v398 = vadd.f32 %v333, %v390
        %v399 = vadd.f32 %v334, %v392
        %v400 = vadd.f32 %v335, %v394
        %v401 = vadd.f32 %v336, %v396
        %402 = vst [vmem:[%s266] sm:$0xff] %v398
        %403 = vst [vmem:[%s266 + $0x8] sm:$0xff] %v399
        %404 = vst [vmem:[%s266 + $0x10] sm:$0xff] %v400
        %405 = vst [vmem:[%s266 + $0x18] sm:$0xff] %v401
        %v406 = vld [vmem:[%s266] sm:$0xff]
        %v407 = vld [vmem:[%s266 + $0x8] sm:$0xff]
        %v408 = vld [vmem:[%s266 + $0x10] sm:$0xff]
        %v409 = vld [vmem:[%s266 + $0x18] sm:$0xff]
        %s410 = scalar_lea.vmem %s0, 8
        %v411 = vld [vmem:[%s410] sm:$0xf]
        %v412 = vld [vmem:[%s410 + $0x4] sm:$0xf]
        %v415 = vunpack.c.l.b16 %v411
        %v416 = vunpack.c.l.b16 %v412
        %v417 = vpack.c.b16 %v416, %v415
        %418 = vrot.lane.b32.xlu0 %v312, 127
        %v419 = vpop.permute.xlu0 %418
        %420 = vrot.lane.b32.xlu0 %v313, 127
        %v421 = vpop.permute.xlu0 %420
        %422 = vrot.lane.b32.xlu0 %v316, 127
        %v423 = vpop.permute.xlu0 %422
        %vm424 = vcmask 1039360
        %v425 = vsel %vm424, %v419, %v421
        %v426 = vsel %vm424, %v421, %v423
        %v428 = vsel %vm344, %v417, 0
        %v431 = vsel %vm348, %v425, 0
        %v434 = vsel %vm348, %v426, 0
        %436 = vmatprep.subr.bf16.mxu0 %v434
        %437 = vmatpush1.bf16.msra.mxu0 %v431
        %438 = vmatprep.subr.bf16.mxu0 0
        %439 = vmatpush1.bf16.msra.mxu0 0
        %440 = vmatprep.subr.bf16.mxu0 0
        %441 = vmatpush1.bf16.msra.mxu0 0
        %442 = vmatprep.subr.bf16.mxu0 0
        %443 = vmatpush1.bf16.msra.mxu0 0
        %444 = vmatprep.subr.bf16.mxu0 0
        %445 = vmatpush1.bf16.msra.mxu0 0
        %446 = vmatprep.subr.bf16.mxu0 0
        %447 = vmatpush1.bf16.msra.mxu0 0
        %448 = vmatprep.subr.bf16.mxu0 0
        %449 = vmatpush1.bf16.msra.mxu0 0
        %450 = vmatprep.subr.bf16.mxu0 0
        %451 = vmatpush1.bf16.msra.mxu0 0
        %452 = vmatprep.subr.bf16.mxu0 0
        %453 = vmatpush1.bf16.msra.mxu0 0
        %454 = vmatprep.subr.bf16.mxu0 0
        %455 = vmatpush1.bf16.msra.mxu0 0
        %456 = vmatprep.subr.bf16.mxu0 0
        %457 = vmatpush1.bf16.msra.mxu0 0
        %458 = vmatprep.subr.bf16.mxu0 0
        %459 = vmatpush1.bf16.msra.mxu0 0
        %460 = vmatprep.subr.bf16.mxu0 0
        %461 = vmatpush1.bf16.msra.mxu0 0
        %462 = vmatprep.subr.bf16.mxu0 0
        %463 = vmatpush1.bf16.msra.mxu0 0
        %464 = vmatprep.subr.bf16.mxu0 0
        %465 = vmatpush1.bf16.msra.mxu0 0
        %466 = vmatprep.subr.bf16.mxu0 0
        %467 = vmatpush1.bf16.msra.mxu0 0
        %468 = vmatprep.mubr.bf16.mxu0 0
        %469 = vmatmul.mubr.bf16.gmra.mrb[0].mxu0 %v428
        %v470 = vpop.f32.mrb[0].mxu0
        %v471 = vadd.f32 0.0, %v470
        %v472 = vpop.f32.mrb[0].mxu0
        %v473 = vadd.f32 0.0, %v472
        %v474 = vpop.f32.mrb[0].mxu0
        %v475 = vadd.f32 0.0, %v474
        %v476 = vpop.f32.mrb[0].mxu0
        %v477 = vadd.f32 0.0, %v476
        %478 = vdwg.mxu0
        %v479 = vadd.f32 %v406, %v471
        %v480 = vadd.f32 %v407, %v473
        %v481 = vadd.f32 %v408, %v475
        %v482 = vadd.f32 %v409, %v477
        %483 = vst [vmem:[%s266] sm:$0xff] %v479
        %484 = vst [vmem:[%s266 + $0x8] sm:$0xff] %v480
        %485 = vst [vmem:[%s266 + $0x10] sm:$0xff] %v481
        %486 = vst [vmem:[%s266 + $0x18] sm:$0xff] %v482
        %v487 = vld [vmem:[%s266] sm:$0xff]
        %v488 = vld [vmem:[%s266 + $0x8] sm:$0xff]
        %v489 = vld [vmem:[%s266 + $0x10] sm:$0xff]
        %v490 = vld [vmem:[%s266 + $0x18] sm:$0xff]
        %s491 = scalar_lea.vmem %s0, 16
        %v492 = vld [vmem:[%s491] sm:$0xf]
        %v493 = vld [vmem:[%s491 + $0x4] sm:$0xf]
        %v496 = vunpack.c.l.b16 %v492
        %v497 = vunpack.c.l.b16 %v493
        %v498 = vpack.c.b16 %v497, %v496
        %499 = vrot.lane.b32.xlu0 %v312, 126
        %v500 = vpop.permute.xlu0 %499
        %501 = vrot.lane.b32.xlu0 %v313, 126
        %v502 = vpop.permute.xlu0 %501
        %503 = vrot.lane.b32.xlu0 %v316, 126
        %v504 = vpop.permute.xlu0 %503
        %vm505 = vcmask 1031168
        %v506 = vsel %vm505, %v500, %v502
        %v507 = vsel %vm505, %v502, %v504
        %v509 = vsel %vm344, %v498, 0
        %v512 = vsel %vm348, %v506, 0
        %v515 = vsel %vm348, %v507, 0
        %517 = vmatprep.subr.bf16.mxu0 %v515
        %518 = vmatpush1.bf16.msra.mxu0 %v512
        %519 = vmatprep.subr.bf16.mxu0 0
        %520 = vmatpush1.bf16.msra.mxu0 0
        %521 = vmatprep.subr.bf16.mxu0 0
        %522 = vmatpush1.bf16.msra.mxu0 0
        %523 = vmatprep.subr.bf16.mxu0 0
        %524 = vmatpush1.bf16.msra.mxu0 0
        %525 = vmatprep.subr.bf16.mxu0 0
        %526 = vmatpush1.bf16.msra.mxu0 0
        %527 = vmatprep.subr.bf16.mxu0 0
        %528 = vmatpush1.bf16.msra.mxu0 0
        %529 = vmatprep.subr.bf16.mxu0 0
        %530 = vmatpush1.bf16.msra.mxu0 0
        %531 = vmatprep.subr.bf16.mxu0 0
        %532 = vmatpush1.bf16.msra.mxu0 0
        %533 = vmatprep.subr.bf16.mxu0 0
        %534 = vmatpush1.bf16.msra.mxu0 0
        %535 = vmatprep.subr.bf16.mxu0 0
        %536 = vmatpush1.bf16.msra.mxu0 0
        %537 = vmatprep.subr.bf16.mxu0 0
        %538 = vmatpush1.bf16.msra.mxu0 0
        %539 = vmatprep.subr.bf16.mxu0 0
        %540 = vmatpush1.bf16.msra.mxu0 0
        %541 = vmatprep.subr.bf16.mxu0 0
        %542 = vmatpush1.bf16.msra.mxu0 0
        %543 = vmatprep.subr.bf16.mxu0 0
        %544 = vmatpush1.bf16.msra.mxu0 0
        %545 = vmatprep.subr.bf16.mxu0 0
        %546 = vmatpush1.bf16.msra.mxu0 0
        %547 = vmatprep.subr.bf16.mxu0 0
        %548 = vmatpush1.bf16.msra.mxu0 0
        %549 = vmatprep.mubr.bf16.mxu0 0
        %550 = vmatmul.mubr.bf16.gmra.mrb[0].mxu0 %v509
        %v551 = vpop.f32.mrb[0].mxu0
        %v552 = vadd.f32 0.0, %v551
        %v553 = vpop.f32.mrb[0].mxu0
        %v554 = vadd.f32 0.0, %v553
        %v555 = vpop.f32.mrb[0].mxu0
        %v556 = vadd.f32 0.0, %v555
        %v557 = vpop.f32.mrb[0].mxu0
        %v558 = vadd.f32 0.0, %v557
        %559 = vdwg.mxu0
        %v560 = vadd.f32 %v487, %v552
        %v561 = vadd.f32 %v488, %v554
        %v562 = vadd.f32 %v489, %v556
        %v563 = vadd.f32 %v490, %v558
        %564 = vst [vmem:[%s266] sm:$0xff] %v560
        %565 = vst [vmem:[%s266 + $0x8] sm:$0xff] %v561
        %566 = vst [vmem:[%s266 + $0x10] sm:$0xff] %v562
        %567 = vst [vmem:[%s266 + $0x18] sm:$0xff] %v563
        %v568 = vld [vmem:[%s266] sm:$0xff]
        %v569 = vld [vmem:[%s266 + $0x8] sm:$0xff]
        %v570 = vld [vmem:[%s266 + $0x10] sm:$0xff]
        %v571 = vld [vmem:[%s266 + $0x18] sm:$0xff]
        %s572 = scalar_lea.vmem %s0, 24
        %v573 = vld [vmem:[%s572] sm:$0xf]
        %v574 = vld [vmem:[%s572 + $0x4] sm:$0xf]
        %v577 = vunpack.c.l.b16 %v573
        %v578 = vunpack.c.l.b16 %v574
        %v579 = vpack.c.b16 %v578, %v577
        %580 = vrot.lane.b32.xlu0 %v312, 110
        %v581 = vpop.permute.xlu0 %580
        %582 = vrot.lane.b32.xlu0 %v313, 110
        %v583 = vpop.permute.xlu0 %582
        %584 = vrot.lane.b32.xlu0 %v316, 110
        %v585 = vpop.permute.xlu0 %584
        %vm586 = vcmask 900096
        %v587 = vsel %vm586, %v581, %v583
        %v588 = vsel %vm586, %v583, %v585
        %v590 = vsel %vm344, %v579, 0
        %v593 = vsel %vm348, %v587, 0
        %v596 = vsel %vm348, %v588, 0
        %598 = vmatprep.subr.bf16.mxu0 %v596
        %599 = vmatpush1.bf16.msra.mxu0 %v593
        %600 = vmatprep.subr.bf16.mxu0 0
        %601 = vmatpush1.bf16.msra.mxu0 0
        %602 = vmatprep.subr.bf16.mxu0 0
        %603 = vmatpush1.bf16.msra.mxu0 0
        %604 = vmatprep.subr.bf16.mxu0 0
        %605 = vmatpush1.bf16.msra.mxu0 0
        %606 = vmatprep.subr.bf16.mxu0 0
        %607 = vmatpush1.bf16.msra.mxu0 0
        %608 = vmatprep.subr.bf16.mxu0 0
        %609 = vmatpush1.bf16.msra.mxu0 0
        %610 = vmatprep.subr.bf16.mxu0 0
        %611 = vmatpush1.bf16.msra.mxu0 0
        %612 = vmatprep.subr.bf16.mxu0 0
        %613 = vmatpush1.bf16.msra.mxu0 0
        %614 = vmatprep.subr.bf16.mxu0 0
        %615 = vmatpush1.bf16.msra.mxu0 0
        %616 = vmatprep.subr.bf16.mxu0 0
        %617 = vmatpush1.bf16.msra.mxu0 0
        %618 = vmatprep.subr.bf16.mxu0 0
        %619 = vmatpush1.bf16.msra.mxu0 0
        %620 = vmatprep.subr.bf16.mxu0 0
        %621 = vmatpush1.bf16.msra.mxu0 0
        %622 = vmatprep.subr.bf16.mxu0 0
        %623 = vmatpush1.bf16.msra.mxu0 0
        %624 = vmatprep.subr.bf16.mxu0 0
        %625 = vmatpush1.bf16.msra.mxu0 0
        %626 = vmatprep.subr.bf16.mxu0 0
        %627 = vmatpush1.bf16.msra.mxu0 0
        %628 = vmatprep.subr.bf16.mxu0 0
        %629 = vmatpush1.bf16.msra.mxu0 0
        %630 = vmatprep.mubr.bf16.mxu0 0
        %631 = vmatmul.mubr.bf16.gmra.mrb[0].mxu0 %v590
        %v632 = vpop.f32.mrb[0].mxu0
        %v633 = vadd.f32 0.0, %v632
        %v634 = vpop.f32.mrb[0].mxu0
        %v635 = vadd.f32 0.0, %v634
        %v636 = vpop.f32.mrb[0].mxu0
        %v637 = vadd.f32 0.0, %v636
        %v638 = vpop.f32.mrb[0].mxu0
        %v639 = vadd.f32 0.0, %v638
        %640 = vdwg.mxu0
        %v641 = vadd.f32 %v568, %v633
        %v642 = vadd.f32 %v569, %v635
        %v643 = vadd.f32 %v570, %v637
        %v644 = vadd.f32 %v571, %v639
        %645 = vst [vmem:[%s266] sm:$0xff] %v641
        %646 = vst [vmem:[%s266 + $0x8] sm:$0xff] %v642
        %647 = vst [vmem:[%s266 + $0x10] sm:$0xff] %v643
        %648 = vst [vmem:[%s266 + $0x18] sm:$0xff] %v644
        %v649 = vld [vmem:[%s266] sm:$0xff]
        %v650 = vld [vmem:[%s266 + $0x8] sm:$0xff]
        %v651 = vld [vmem:[%s266 + $0x10] sm:$0xff]
        %v652 = vld [vmem:[%s266 + $0x18] sm:$0xff]
        %s653 = scalar_lea.vmem %s0, 32
        %v654 = vld [vmem:[%s653] sm:$0xf]
        %v655 = vld [vmem:[%s653 + $0x4] sm:$0xf]
        %v658 = vunpack.c.l.b16 %v654
        %v659 = vunpack.c.l.b16 %v655
        %v660 = vpack.c.b16 %v659, %v658
        %661 = vrot.lane.b32.xlu0 %v312, 109
        %v662 = vpop.permute.xlu0 %661
        %663 = vrot.lane.b32.xlu0 %v313, 109
        %v664 = vpop.permute.xlu0 %663
        %665 = vrot.lane.b32.xlu0 %v316, 109
        %v666 = vpop.permute.xlu0 %665
        %vm667 = vcmask 891904
        %v668 = vsel %vm667, %v662, %v664
        %v669 = vsel %vm667, %v664, %v666
        %v671 = vsel %vm344, %v660, 0
        %v674 = vsel %vm348, %v668, 0
        %v677 = vsel %vm348, %v669, 0
        %679 = vmatprep.subr.bf16.mxu0 %v677
        %680 = vmatpush1.bf16.msra.mxu0 %v674
        %681 = vmatprep.subr.bf16.mxu0 0
        %682 = vmatpush1.bf16.msra.mxu0 0
        %683 = vmatprep.subr.bf16.mxu0 0
        %684 = vmatpush1.bf16.msra.mxu0 0
        %685 = vmatprep.subr.bf16.mxu0 0
        %686 = vmatpush1.bf16.msra.mxu0 0
        %687 = vmatprep.subr.bf16.mxu0 0
        %688 = vmatpush1.bf16.msra.mxu0 0
        %689 = vmatprep.subr.bf16.mxu0 0
        %690 = vmatpush1.bf16.msra.mxu0 0
        %691 = vmatprep.subr.bf16.mxu0 0
        %692 = vmatpush1.bf16.msra.mxu0 0
        %693 = vmatprep.subr.bf16.mxu0 0
        %694 = vmatpush1.bf16.msra.mxu0 0
        %695 = vmatprep.subr.bf16.mxu0 0
        %696 = vmatpush1.bf16.msra.mxu0 0
        %697 = vmatprep.subr.bf16.mxu0 0
        %698 = vmatpush1.bf16.msra.mxu0 0
        %699 = vmatprep.subr.bf16.mxu0 0
        %700 = vmatpush1.bf16.msra.mxu0 0
        %701 = vmatprep.subr.bf16.mxu0 0
        %702 = vmatpush1.bf16.msra.mxu0 0
        %703 = vmatprep.subr.bf16.mxu0 0
        %704 = vmatpush1.bf16.msra.mxu0 0
        %705 = vmatprep.subr.bf16.mxu0 0
        %706 = vmatpush1.bf16.msra.mxu0 0
        %707 = vmatprep.subr.bf16.mxu0 0
        %708 = vmatpush1.bf16.msra.mxu0 0
        %709 = vmatprep.subr.bf16.mxu0 0
        %710 = vmatpush1.bf16.msra.mxu0 0
        %711 = vmatprep.mubr.bf16.mxu0 0
        %712 = vmatmul.mubr.bf16.gmra.mrb[0].mxu0 %v671
        %v713 = vpop.f32.mrb[0].mxu0
        %v714 = vadd.f32 0.0, %v713
        %v715 = vpop.f32.mrb[0].mxu0
        %v716 = vadd.f32 0.0, %v715
        %v717 = vpop.f32.mrb[0].mxu0
        %v718 = vadd.f32 0.0, %v717
        %v719 = vpop.f32.mrb[0].mxu0
        %v720 = vadd.f32 0.0, %v719
        %721 = vdwg.mxu0
        %v722 = vadd.f32 %v649, %v714
        %v723 = vadd.f32 %v650, %v716
        %v724 = vadd.f32 %v651, %v718
        %v725 = vadd.f32 %v652, %v720
        %726 = vst [vmem:[%s266] sm:$0xff] %v722
        %727 = vst [vmem:[%s266 + $0x8] sm:$0xff] %v723
        %728 = vst [vmem:[%s266 + $0x10] sm:$0xff] %v724
        %729 = vst [vmem:[%s266 + $0x18] sm:$0xff] %v725
        %v730 = vld [vmem:[%s266] sm:$0xff]
        %v731 = vld [vmem:[%s266 + $0x8] sm:$0xff]
        %v732 = vld [vmem:[%s266 + $0x10] sm:$0xff]
        %v733 = vld [vmem:[%s266 + $0x18] sm:$0xff]
        %s734 = scalar_lea.vmem %s0, 40
        %v735 = vld [vmem:[%s734] sm:$0xf]
        %v736 = vld [vmem:[%s734 + $0x4] sm:$0xf]
        %v739 = vunpack.c.l.b16 %v735
        %v740 = vunpack.c.l.b16 %v736
        %v741 = vpack.c.b16 %v740, %v739
        %742 = vrot.lane.b32.xlu0 %v312, 108
        %v743 = vpop.permute.xlu0 %742
        %744 = vrot.lane.b32.xlu0 %v313, 108
        %v745 = vpop.permute.xlu0 %744
        %746 = vrot.lane.b32.xlu0 %v316, 108
        %v747 = vpop.permute.xlu0 %746
        %vm748 = vcmask 883712
        %v749 = vsel %vm748, %v743, %v745
        %v750 = vsel %vm748, %v745, %v747
        %v752 = vsel %vm344, %v741, 0
        %v755 = vsel %vm348, %v749, 0
        %v758 = vsel %vm348, %v750, 0
        %760 = vmatprep.subr.bf16.mxu0 %v758
        %761 = vmatpush1.bf16.msra.mxu0 %v755
        %762 = vmatprep.subr.bf16.mxu0 0
        %763 = vmatpush1.bf16.msra.mxu0 0
        %764 = vmatprep.subr.bf16.mxu0 0
        %765 = vmatpush1.bf16.msra.mxu0 0
        %766 = vmatprep.subr.bf16.mxu0 0
        %767 = vmatpush1.bf16.msra.mxu0 0
        %768 = vmatprep.subr.bf16.mxu0 0
        %769 = vmatpush1.bf16.msra.mxu0 0
        %770 = vmatprep.subr.bf16.mxu0 0
        %771 = vmatpush1.bf16.msra.mxu0 0
        %772 = vmatprep.subr.bf16.mxu0 0
        %773 = vmatpush1.bf16.msra.mxu0 0
        %774 = vmatprep.subr.bf16.mxu0 0
        %775 = vmatpush1.bf16.msra.mxu0 0
        %776 = vmatprep.subr.bf16.mxu0 0
        %777 = vmatpush1.bf16.msra.mxu0 0
        %778 = vmatprep.subr.bf16.mxu0 0
        %779 = vmatpush1.bf16.msra.mxu0 0
        %780 = vmatprep.subr.bf16.mxu0 0
        %781 = vmatpush1.bf16.msra.mxu0 0
        %782 = vmatprep.subr.bf16.mxu0 0
        %783 = vmatpush1.bf16.msra.mxu0 0
        %784 = vmatprep.subr.bf16.mxu0 0
        %785 = vmatpush1.bf16.msra.mxu0 0
        %786 = vmatprep.subr.bf16.mxu0 0
        %787 = vmatpush1.bf16.msra.mxu0 0
        %788 = vmatprep.subr.bf16.mxu0 0
        %789 = vmatpush1.bf16.msra.mxu0 0
        %790 = vmatprep.subr.bf16.mxu0 0
        %791 = vmatpush1.bf16.msra.mxu0 0
        %792 = vmatprep.mubr.bf16.mxu0 0
        %793 = vmatmul.mubr.bf16.gmra.mrb[0].mxu0 %v752
        %v794 = vpop.f32.mrb[0].mxu0
        %v795 = vadd.f32 0.0, %v794
        %v796 = vpop.f32.mrb[0].mxu0
        %v797 = vadd.f32 0.0, %v796
        %v798 = vpop.f32.mrb[0].mxu0
        %v799 = vadd.f32 0.0, %v798
        %v800 = vpop.f32.mrb[0].mxu0
        %v801 = vadd.f32 0.0, %v800
        %802 = vdwg.mxu0
        %v803 = vadd.f32 %v730, %v795
        %v804 = vadd.f32 %v731, %v797
        %v805 = vadd.f32 %v732, %v799
        %v806 = vadd.f32 %v733, %v801
        %807 = vst [vmem:[%s266] sm:$0xff] %v803
        %808 = vst [vmem:[%s266 + $0x8] sm:$0xff] %v804
        %809 = vst [vmem:[%s266 + $0x10] sm:$0xff] %v805
        %810 = vst [vmem:[%s266 + $0x18] sm:$0xff] %v806
        %v811 = vld [vmem:[%s266] sm:$0xff]
        %v812 = vld [vmem:[%s266 + $0x8] sm:$0xff]
        %v813 = vld [vmem:[%s266 + $0x10] sm:$0xff]
        %v814 = vld [vmem:[%s266 + $0x18] sm:$0xff]
        %s815 = scalar_lea.vmem %s0, 48
        %v816 = vld [vmem:[%s815] sm:$0xf]
        %v817 = vld [vmem:[%s815 + $0x4] sm:$0xf]
        %v820 = vunpack.c.l.b16 %v816
        %v821 = vunpack.c.l.b16 %v817
        %v822 = vpack.c.b16 %v821, %v820
        %823 = vrot.lane.b32.xlu0 %v312, 92
        %v824 = vpop.permute.xlu0 %823
        %825 = vrot.lane.b32.xlu0 %v313, 92
        %v826 = vpop.permute.xlu0 %825
        %827 = vrot.lane.b32.xlu0 %v316, 92
        %v828 = vpop.permute.xlu0 %827
        %vm829 = vcmask 752640
        %v830 = vsel %vm829, %v824, %v826
        %v831 = vsel %vm829, %v826, %v828
        %v833 = vsel %vm344, %v822, 0
        %v836 = vsel %vm348, %v830, 0
        %v839 = vsel %vm348, %v831, 0
        %841 = vmatprep.subr.bf16.mxu0 %v839
        %842 = vmatpush1.bf16.msra.mxu0 %v836
        %843 = vmatprep.subr.bf16.mxu0 0
        %844 = vmatpush1.bf16.msra.mxu0 0
        %845 = vmatprep.subr.bf16.mxu0 0
        %846 = vmatpush1.bf16.msra.mxu0 0
        %847 = vmatprep.subr.bf16.mxu0 0
        %848 = vmatpush1.bf16.msra.mxu0 0
        %849 = vmatprep.subr.bf16.mxu0 0
        %850 = vmatpush1.bf16.msra.mxu0 0
        %851 = vmatprep.subr.bf16.mxu0 0
        %852 = vmatpush1.bf16.msra.mxu0 0
        %853 = vmatprep.subr.bf16.mxu0 0
        %854 = vmatpush1.bf16.msra.mxu0 0
        %855 = vmatprep.subr.bf16.mxu0 0
        %856 = vmatpush1.bf16.msra.mxu0 0
        %857 = vmatprep.subr.bf16.mxu0 0
        %858 = vmatpush1.bf16.msra.mxu0 0
        %859 = vmatprep.subr.bf16.mxu0 0
        %860 = vmatpush1.bf16.msra.mxu0 0
        %861 = vmatprep.subr.bf16.mxu0 0
        %862 = vmatpush1.bf16.msra.mxu0 0
        %863 = vmatprep.subr.bf16.mxu0 0
        %864 = vmatpush1.bf16.msra.mxu0 0
        %865 = vmatprep.subr.bf16.mxu0 0
        %866 = vmatpush1.bf16.msra.mxu0 0
        %867 = vmatprep.subr.bf16.mxu0 0
        %868 = vmatpush1.bf16.msra.mxu0 0
        %869 = vmatprep.subr.bf16.mxu0 0
        %870 = vmatpush1.bf16.msra.mxu0 0
        %871 = vmatprep.subr.bf16.mxu0 0
        %872 = vmatpush1.bf16.msra.mxu0 0
        %873 = vmatprep.mubr.bf16.mxu0 0
        %874 = vmatmul.mubr.bf16.gmra.mrb[0].mxu0 %v833
        %v875 = vpop.f32.mrb[0].mxu0
        %v876 = vadd.f32 0.0, %v875
        %v877 = vpop.f32.mrb[0].mxu0
        %v878 = vadd.f32 0.0, %v877
        %v879 = vpop.f32.mrb[0].mxu0
        %v880 = vadd.f32 0.0, %v879
        %v881 = vpop.f32.mrb[0].mxu0
        %v882 = vadd.f32 0.0, %v881
        %883 = vdwg.mxu0
        %v884 = vadd.f32 %v811, %v876
        %v885 = vadd.f32 %v812, %v878
        %v886 = vadd.f32 %v813, %v880
        %v887 = vadd.f32 %v814, %v882
        %888 = vst [vmem:[%s266] sm:$0xff] %v884
        %889 = vst [vmem:[%s266 + $0x8] sm:$0xff] %v885
        %890 = vst [vmem:[%s266 + $0x10] sm:$0xff] %v886
        %891 = vst [vmem:[%s266 + $0x18] sm:$0xff] %v887
        %v892 = vld [vmem:[%s266] sm:$0xff]
        %v893 = vld [vmem:[%s266 + $0x8] sm:$0xff]
        %v894 = vld [vmem:[%s266 + $0x10] sm:$0xff]
        %v895 = vld [vmem:[%s266 + $0x18] sm:$0xff]
        %s896 = scalar_lea.vmem %s0, 56
        %v897 = vld [vmem:[%s896] sm:$0xf]
        %v898 = vld [vmem:[%s896 + $0x4] sm:$0xf]
        %v901 = vunpack.c.l.b16 %v897
        %v902 = vunpack.c.l.b16 %v898
        %v903 = vpack.c.b16 %v902, %v901
        %904 = vrot.lane.b32.xlu0 %v312, 91
        %v905 = vpop.permute.xlu0 %904
        %906 = vrot.lane.b32.xlu0 %v313, 91
        %v907 = vpop.permute.xlu0 %906
        %908 = vrot.lane.b32.xlu0 %v316, 91
        %v909 = vpop.permute.xlu0 %908
        %vm910 = vcmask 744448
        %v911 = vsel %vm910, %v905, %v907
        %v912 = vsel %vm910, %v907, %v909
        %v914 = vsel %vm344, %v903, 0
        %v917 = vsel %vm348, %v911, 0
        %v920 = vsel %vm348, %v912, 0
        %922 = vmatprep.subr.bf16.mxu0 %v920
        %923 = vmatpush1.bf16.msra.mxu0 %v917
        %924 = vmatprep.subr.bf16.mxu0 0
        %925 = vmatpush1.bf16.msra.mxu0 0
        %926 = vmatprep.subr.bf16.mxu0 0
        %927 = vmatpush1.bf16.msra.mxu0 0
        %928 = vmatprep.subr.bf16.mxu0 0
        %929 = vmatpush1.bf16.msra.mxu0 0
        %930 = vmatprep.subr.bf16.mxu0 0
        %931 = vmatpush1.bf16.msra.mxu0 0
        %932 = vmatprep.subr.bf16.mxu0 0
        %933 = vmatpush1.bf16.msra.mxu0 0
        %934 = vmatprep.subr.bf16.mxu0 0
        %935 = vmatpush1.bf16.msra.mxu0 0
        %936 = vmatprep.subr.bf16.mxu0 0
        %937 = vmatpush1.bf16.msra.mxu0 0
        %938 = vmatprep.subr.bf16.mxu0 0
        %939 = vmatpush1.bf16.msra.mxu0 0
        %940 = vmatprep.subr.bf16.mxu0 0
        %941 = vmatpush1.bf16.msra.mxu0 0
        %942 = vmatprep.subr.bf16.mxu0 0
        %943 = vmatpush1.bf16.msra.mxu0 0
        %944 = vmatprep.subr.bf16.mxu0 0
        %945 = vmatpush1.bf16.msra.mxu0 0
        %946 = vmatprep.subr.bf16.mxu0 0
        %947 = vmatpush1.bf16.msra.mxu0 0
        %948 = vmatprep.subr.bf16.mxu0 0
        %949 = vmatpush1.bf16.msra.mxu0 0
        %950 = vmatprep.subr.bf16.mxu0 0
        %951 = vmatpush1.bf16.msra.mxu0 0
        %952 = vmatprep.subr.bf16.mxu0 0
        %953 = vmatpush1.bf16.msra.mxu0 0
        %954 = vmatprep.mubr.bf16.mxu0 0
        %955 = vmatmul.mubr.bf16.gmra.mrb[0].mxu0 %v914
        %v956 = vpop.f32.mrb[0].mxu0
        %v957 = vadd.f32 0.0, %v956
        %v958 = vpop.f32.mrb[0].mxu0
        %v959 = vadd.f32 0.0, %v958
        %v960 = vpop.f32.mrb[0].mxu0
        %v961 = vadd.f32 0.0, %v960
        %v962 = vpop.f32.mrb[0].mxu0
        %v963 = vadd.f32 0.0, %v962
        %964 = vdwg.mxu0
        %v965 = vadd.f32 %v892, %v957
        %v966 = vadd.f32 %v893, %v959
        %v967 = vadd.f32 %v894, %v961
        %v968 = vadd.f32 %v895, %v963
        %969 = vst [vmem:[%s266] sm:$0xff] %v965
        %970 = vst [vmem:[%s266 + $0x8] sm:$0xff] %v966
        %971 = vst [vmem:[%s266 + $0x10] sm:$0xff] %v967
        %972 = vst [vmem:[%s266 + $0x18] sm:$0xff] %v968
        %v973 = vld [vmem:[%s266] sm:$0xff]
        %v974 = vld [vmem:[%s266 + $0x8] sm:$0xff]
        %v975 = vld [vmem:[%s266 + $0x10] sm:$0xff]
        %v976 = vld [vmem:[%s266 + $0x18] sm:$0xff]
        %s977 = scalar_lea.vmem %s0, 64
        %v978 = vld [vmem:[%s977] sm:$0xf]
        %v979 = vld [vmem:[%s977 + $0x4] sm:$0xf]
        %v982 = vunpack.c.l.b16 %v978
        %v983 = vunpack.c.l.b16 %v979
        %v984 = vpack.c.b16 %v983, %v982
        %985 = vrot.lane.b32.xlu0 %v312, 90
        %v986 = vpop.permute.xlu0 %985
        %987 = vrot.lane.b32.xlu0 %v313, 90
        %v988 = vpop.permute.xlu0 %987
        %989 = vrot.lane.b32.xlu0 %v316, 90
        %v990 = vpop.permute.xlu0 %989
        %vm991 = vcmask 736256
        %v992 = vsel %vm991, %v986, %v988
        %v993 = vsel %vm991, %v988, %v990
        %v995 = vsel %vm344, %v984, 0
        %v998 = vsel %vm348, %v992, 0
        %v1001 = vsel %vm348, %v993, 0
        %1003 = vmatprep.subr.bf16.mxu0 %v1001
        %1004 = vmatpush1.bf16.msra.mxu0 %v998
        %1005 = vmatprep.subr.bf16.mxu0 0
        %1006 = vmatpush1.bf16.msra.mxu0 0
        %1007 = vmatprep.subr.bf16.mxu0 0
        %1008 = vmatpush1.bf16.msra.mxu0 0
        %1009 = vmatprep.subr.bf16.mxu0 0
        %1010 = vmatpush1.bf16.msra.mxu0 0
        %1011 = vmatprep.subr.bf16.mxu0 0
        %1012 = vmatpush1.bf16.msra.mxu0 0
        %1013 = vmatprep.subr.bf16.mxu0 0
        %1014 = vmatpush1.bf16.msra.mxu0 0
        %1015 = vmatprep.subr.bf16.mxu0 0
        %1016 = vmatpush1.bf16.msra.mxu0 0
        %1017 = vmatprep.subr.bf16.mxu0 0
        %1018 = vmatpush1.bf16.msra.mxu0 0
        %1019 = vmatprep.subr.bf16.mxu0 0
        %1020 = vmatpush1.bf16.msra.mxu0 0
        %1021 = vmatprep.subr.bf16.mxu0 0
        %1022 = vmatpush1.bf16.msra.mxu0 0
        %1023 = vmatprep.subr.bf16.mxu0 0
        %1024 = vmatpush1.bf16.msra.mxu0 0
        %1025 = vmatprep.subr.bf16.mxu0 0
        %1026 = vmatpush1.bf16.msra.mxu0 0
        %1027 = vmatprep.subr.bf16.mxu0 0
        %1028 = vmatpush1.bf16.msra.mxu0 0
        %1029 = vmatprep.subr.bf16.mxu0 0
        %1030 = vmatpush1.bf16.msra.mxu0 0
        %1031 = vmatprep.subr.bf16.mxu0 0
        %1032 = vmatpush1.bf16.msra.mxu0 0
        %1033 = vmatprep.subr.bf16.mxu0 0
        %1034 = vmatpush1.bf16.msra.mxu0 0
        %1035 = vmatprep.mubr.bf16.mxu0 0
        %1036 = vmatmul.mubr.bf16.gmra.mrb[0].mxu0 %v995
        %v1037 = vpop.f32.mrb[0].mxu0
        %v1038 = vadd.f32 0.0, %v1037
        %v1039 = vpop.f32.mrb[0].mxu0
        %v1040 = vadd.f32 0.0, %v1039
        %v1041 = vpop.f32.mrb[0].mxu0
        %v1042 = vadd.f32 0.0, %v1041
        %v1043 = vpop.f32.mrb[0].mxu0
        %v1044 = vadd.f32 0.0, %v1043
        %1045 = vdwg.mxu0
        %v1046 = vadd.f32 %v973, %v1038
        %v1047 = vadd.f32 %v974, %v1040
        %v1048 = vadd.f32 %v975, %v1042
        %v1049 = vadd.f32 %v976, %v1044
        %1050 = vst [vmem:[%s266] sm:$0xff] %v1046
        %1051 = vst [vmem:[%s266 + $0x8] sm:$0xff] %v1047
        %1052 = vst [vmem:[%s266 + $0x10] sm:$0xff] %v1048
        %1053 = vst [vmem:[%s266 + $0x18] sm:$0xff] %v1049
        %s1054 = sand.u32 %s137, 1
        %s1055 = sand.u32 %s137, 1
        %s1056 = smul.addr %s1055, 32
        %s1057 = scalar_lea.vmem [#allocation2], %s1056
        // Predicated region
        $region37: #{complex_conv2d.1} parent=35 // pred_check
          %p1058 = pneg %p147
        $region38: #{complex_conv2d.1} parent=35 // pred_check_branch
          %1060 = sbr.rel (%p1058) target = $region40
        $region39: #{complex_conv2d.1} parent=35 // pred_region
          %s1061 = smul.u32 2, %s20
          %s1062 = smul.addr %s19, 8
          %s1063 = sadd.s32 %s1061, %s1062
          %s1064 = smul.addr %s1063, 8
          %s1065 = scalar_lea.vmem %s4, %s1064
          // Predicated region
          $region41: #{complex_conv2d.1} parent=39 // pred_check
            _
          $region42: #{complex_conv2d.1} parent=39 // pred_check_branch
            %1067 = sbr.rel (0) target = $region44
          $region43: #{complex_conv2d.1} parent=39 // pred_region
            // Predicated region
            $region45: #{complex_conv2d.1} parent=43 // pred_check
              _
            $region46: #{complex_conv2d.1} parent=43 // pred_check_branch
              %1069 = sbr.rel (0) target = $region48
            $region47: #{complex_conv2d.1} parent=43 // pred_region
              loop: start=0, step=1, limit=1
              $region49: #{complex_conv2d.1} parent=47 // loop_pre_header
                _
              $region50: #{complex_conv2d.1} parent=47 // loop_header
                %s1071 = sphi 0, %s1075
                %p1072 = scmp.ge.s32.totalorder %s1071, 1
                %s1076 = sphi %s1057, %s1057
                %s1077 = sphi %s1065, %s1065
              $region51: #{complex_conv2d.1} parent=47 // loop_header_branch
                %1074 = sbr.rel (%p1072) target = $region55
              $region52: #{complex_conv2d.1} parent=47 // loop_body
                %v1078 = vld [vmem:[%s1076] sm:$0xff]
                %1079 = vst [vmem:[%s1077] sm:$0xff] %v1078
                %v1080 = vld [vmem:[%s1076 + $0x8] sm:$0xff]
                %1081 = vst [vmem:[%s1077 + $0x8] sm:$0xff] %v1080
                %v1082 = vld [vmem:[%s1076 + $0x10] sm:$0xff]
                %1083 = vst [vmem:[%s1077 + $0x20] sm:$0xff] %v1082
                %v1084 = vld [vmem:[%s1076 + $0x18] sm:$0xff]
                %1085 = vst [vmem:[%s1077 + $0x28] sm:$0xff] %v1084
              $region53: #{complex_conv2d.1} parent=47 // loop_footer
                %s1075 = sadd.s32 1, %s1071
              $region54: #{complex_conv2d.1} parent=47 // loop_footer_branch
                %1070 = sbr.rel target = $region50
              $region55: #{complex_conv2d.1} parent=47 // loop_exit
                _
            $region48: #{complex_conv2d.1} parent=43 // pred_fallthru
              _
            // Predicated region
            $region56: #{complex_conv2d.1} parent=43 // pred_check
              _
            $region57: #{complex_conv2d.1} parent=43 // pred_check_branch
              %1087 = sbr.rel target = $region59
            $region58: #{complex_conv2d.1} parent=43 // pred_region
              _
            $region59: #{complex_conv2d.1} parent=43 // pred_fallthru
              _
          $region44: #{complex_conv2d.1} parent=39 // pred_fallthru
            _
          %1088 = vnop
        $region40: #{complex_conv2d.1} parent=35 // pred_fallthru
          _
      $region36: #{complex_conv2d.1} parent=5 // pred_fallthru
        _
      %p1089 = scmp.le.s32.totalorder 2, %s10
      // Predicated region
      $region60: #{complex_conv2d.1} parent=5 // pred_check
        %p1090 = pneg %p1089
      $region61: #{complex_conv2d.1} parent=5 // pred_check_branch
        %1092 = sbr.rel (%p1090) target = $region63
      $region62: #{complex_conv2d.1} parent=5 // pred_region
        %s1093 = ssub.s32 %s10, 2
        // Predicated region
        $region64: #{complex_conv2d.1} parent=62 // pred_check
          %p1094 = pneg %p153
        $region65: #{complex_conv2d.1} parent=62 // pred_check_branch
          %1096 = sbr.rel (%p1094) target = $region67
        $region66: #{complex_conv2d.1} parent=62 // pred_region
          %s1097 = sand.u32 %s138, 1
          %s1098 = sand.u32 %s138, 1
          %s1099 = smul.addr %s1098, 32
          %s1100 = scalar_lea.vmem [#allocation2], %s1099
        $region67: #{complex_conv2d.1} parent=62 // pred_fallthru
          _
      $region63: #{complex_conv2d.1} parent=5 // pred_fallthru
        _
    $region6: #{complex_conv2d.1} parent=1 // loop_footer
      %s14 = sadd.s32 1, %s10
    $region7: #{complex_conv2d.1} parent=1 // loop_footer_branch
      %9 = sbr.rel target = $region3
    $region8: #{complex_conv2d.1} parent=1 // loop_exit
      _

</llo_original>
